<compile_context>
chip_gen: v6e
topology: v6e:2x2x1
jax: 0.10.0
libtpu: 0.0.40
codegen_flags: <defaults>
</compile_context>

<pallas_src>
import jax
import jax.numpy as jnp
from jax import lax
from jax.experimental import pallas as pl
from jax.experimental.pallas import tpu as pltpu

EPS = 1e-5


def _width_toeplitz(w_hwio, W):
    """Block-Toeplitz matrices turning the width dim of a 'same' conv into a matmul.

    Returns T of shape (K * W * Cin, W * Cout) such that for height tap kh:
      out_row[n, h, w*Cout + co] += in_row[n, h + kh - P] @ T[kh*W*Cin:(kh+1)*W*Cin]
    where in_row is an image row flattened as (W*Cin,) (w-major, c-minor) and the
    width zero padding is folded into the zeros of T.
    """
    K, _, Cin, Cout = w_hwio.shape
    P = K // 2
    w_idx = jnp.arange(W)
    blocks = []
    for kh in range(K):
        t_kh = jnp.zeros((W * Cin, W * Cout), jnp.float32)
        for kw in range(K):
            shift = kw - P
            # sel[w_in, w_out] = 1 iff w_in == w_out + kw - P (out-of-range -> 0 pad)
            sel = (w_idx[:, None] == (w_idx[None, :] + shift)).astype(jnp.float32)
            t_kh = t_kh + jnp.kron(sel, w_hwio[kh, kw].astype(jnp.float32))
        blocks.append(t_kh)
    return jnp.concatenate(blocks, axis=0)


def _make_double_conv_kernel(N, H, W, K, Cin, Chid, Cout, add_residual, eps=EPS):
    P = K // 2
    NH = N * H
    inv_count = 1.0 / float(N * H * W)

    def channel_totals(stats, C):
        """stats: (R, W*C), lanes w-major / channel-minor. Returns (R, W*C) where
        every lane holds the total over all W width positions of its channel
        (per-channel reduce + broadcast via exact-f32 XLU lane rolls)."""
        L = W * C
        tot = stats
        if W & (W - 1) == 0:                      # power-of-two width: log2 tree
            shift = C
            while shift < L:
                tot = tot + pltpu.roll(tot, shift=shift, axis=1)
                shift *= 2
        else:                                     # generic width: W-1 rolls
            for k in range(1, W):
                tot = tot + pltpu.roll(stats, shift=k * C, axis=1)
        return tot

    def bn_relu(acc, p_ref, C):
        # acc: (NH, W*C) f32.  p_ref rows: 0 = bias (already added to acc),
        # 1 = gamma, 2 = beta, each tiled W times along the lane axis.
        stats = jnp.concatenate(
            [jnp.sum(acc, axis=0, keepdims=True),
             jnp.sum(acc * acc, axis=0, keepdims=True)], axis=0)   # (2, W*C)
        tot = channel_totals(stats, C)
        mean = tot[0:1, :] * inv_count
        var = tot[1:2, :] * inv_count - mean * mean                # one-pass var
        scale = lax.rsqrt(var + eps) * p_ref[1:2, :]
        return jnp.maximum((acc - mean) * scale + p_ref[2:3, :], 0.0)

    def kernel(x_ref, t1_ref, t2_ref, p1_ref, p2_ref, out_ref, h_ref):
        # ---------------- layer 1: conv1 + bias + BN + ReLU ----------------
        # Merge the K height taps into a single matmul contraction of K*W*Cin.
        pat1 = jnp.concatenate(
            [x_ref[:, kh:kh + H, :] for kh in range(K)], axis=-1)
        pat1 = pat1.reshape(NH, K * W * Cin)
        acc1 = jnp.dot(pat1, t1_ref[...], preferred_element_type=jnp.float32)
        acc1 = acc1 + p1_ref[0:1, :]                       # conv1 bias
        y1 = bn_relu(acc1, p1_ref, Chid)                   # (NH, W*Chid)

        # Hidden activation stays on-chip: height-padded VMEM scratch.
        h_ref[...] = jnp.zeros((N, H + 2 * P, W * Chid), jnp.float32)
        h_ref[:, P:P + H, :] = y1.reshape(N, H, W * Chid)

        # ---------------- layer 2: conv2 + bias + BN + ReLU ----------------
        pat2 = jnp.concatenate(
            [h_ref[:, kh:kh + H, :] for kh in range(K)], axis=-1)
        pat2 = pat2.reshape(NH, K * W * Chid)
        acc2 = jnp.dot(pat2, t2_ref[...], preferred_element_type=jnp.float32)
        acc2 = acc2 + p2_ref[0:1, :]                       # conv2 bias
        y2 = bn_relu(acc2, p2_ref, Cout)                   # (NH, W*Cout)

        if add_residual:
            # Residual = un-padded input rows, already in the same lane layout.
            y2 = y2 + x_ref[:, P:P + H, :].reshape(NH, W * Cout)

        out_ref[...] = y2

    return kernel


def double_convolution_block(image_nchw, params, eps=EPS):
    """Pallas equivalent of DoubleConvolutionBlock.forward (NCHW in / NCHW out)."""
    N, Cin, H, W = image_nchw.shape
    K = params["w1"].shape[0]
    Chid = params["w1"].shape[-1]
    Cout = params["w2"].shape[-1]
    P = K // 2
    add_residual = (Cin == Cout)

    # NCHW -> rows of (W*C) lanes (w-major, channel-minor); zero-pad the height.
    x = jnp.transpose(image_nchw, (0, 2, 3, 1)).reshape(N, H, W * Cin)
    x_pad = jnp.pad(x, ((0, 0), (P, P), (0, 0)))

    # Weight / parameter preprocessing (normally done once at init time).
    t1 = _width_toeplitz(params["w1"], W)                   # (K*W*Cin,  W*Chid)
    t2 = _width_toeplitz(params["w2"], W)                   # (K*W*Chid, W*Cout)
    p1 = jnp.stack([jnp.tile(params["b1"], W),
                    jnp.tile(params["g1"], W),
                    jnp.tile(params["beta1"], W)]).astype(jnp.float32)
    p2 = jnp.stack([jnp.tile(params["b2"], W),
                    jnp.tile(params["g2"], W),
                    jnp.tile(params["beta2"], W)]).astype(jnp.float32)

    kernel = _make_double_conv_kernel(N, H, W, K, Cin, Chid, Cout,
                                      add_residual, eps)

    # TODO(synk): for production-size feature maps (and v7x's two TensorCores),
    # tile N/H with a parallel grid plus a two-pass BN (cross-tile sum /
    # sum-of-squares reduction). With the whole batch in one block the in-kernel
    # batch statistics are exact, so grid=(1,) is used at these small shapes.
    out2d = pl.pallas_call(
        kernel,
        out_shape=jax.ShapeDtypeStruct((N * H, W * Cout), jnp.float32),
        grid=(1,),
        in_specs=[
            pl.BlockSpec((N, H + 2 * P, W * Cin), lambda i: (0, 0, 0)),
            pl.BlockSpec((K * W * Cin, W * Chid), lambda i: (0, 0)),
            pl.BlockSpec((K * W * Chid, W * Cout), lambda i: (0, 0)),
            pl.BlockSpec((3, W * Chid), lambda i: (0, 0)),
            pl.BlockSpec((3, W * Cout), lambda i: (0, 0)),
        ],
        out_specs=pl.BlockSpec((N * H, W * Cout), lambda i: (0, 0)),
        scratch_shapes=[pltpu.VMEM((N, H + 2 * P, W * Chid), jnp.float32)],
        compiler_params=pltpu.CompilerParams(
            dimension_semantics=("arbitrary",)),
    )(x_pad, t1, t2, p1, p2)

    y = out2d.reshape(N, H, W, Cout)
    return jnp.transpose(y, (0, 3, 1, 2))


def reference(image_nchw, params, eps=EPS):
    """Pure-JAX reference reproducing the PyTorch forward semantics."""
    def conv(x, w_hwio, b):
        w_oihw = jnp.transpose(w_hwio, (3, 2, 0, 1))
        y = lax.conv_general_dilated(
            x, w_oihw, window_strides=(1, 1), padding="SAME",
            dimension_numbers=("NCHW", "OIHW", "NCHW"))
        return y + b[None, :, None, None]

    def bn(x, g, be):
        mean = jnp.mean(x, axis=(0, 2, 3), keepdims=True)
        var = jnp.mean((x - mean) ** 2, axis=(0, 2, 3), keepdims=True)
        return ((x - mean) * lax.rsqrt(var + eps)
                * g[None, :, None, None] + be[None, :, None, None])

    h = jax.nn.relu(bn(conv(image_nchw, params["w1"], params["b1"]),
                       params["g1"], params["beta1"]))
    y = jax.nn.relu(bn(conv(h, params["w2"], params["b2"]),
                       params["g2"], params["beta2"]))
    if image_nchw.shape[1] == y.shape[1]:
        y = y + image_nchw
    return y


if __name__ == "__main__":
    # Module config: channel_count_in=4, channel_count_out=4 (residual active),
    # channel_count_hidden=8, kernel_size=3.
    N, Cin, H, W = 2, 4, 16, 16
    Chid, Cout, K = 8, 4, 3

    key = jax.random.PRNGKey(0)
    ks = jax.random.split(key, 9)
    image = jax.random.normal(ks[0], (N, Cin, H, W), jnp.float32)

    # Deterministic synthetic parameters (conv weights stored in HWIO layout).
    params = dict(
        w1=0.1 * jax.random.normal(ks[1], (K, K, Cin, Chid), jnp.float32),
        b1=0.05 * jax.random.normal(ks[2], (Chid,), jnp.float32),
        g1=1.0 + 0.1 * jax.random.normal(ks[3], (Chid,), jnp.float32),
        beta1=0.05 * jax.random.normal(ks[4], (Chid,), jnp.float32),
        w2=0.1 * jax.random.normal(ks[5], (K, K, Chid, Cout), jnp.float32),
        b2=0.05 * jax.random.normal(ks[6], (Cout,), jnp.float32),
        g2=1.0 + 0.1 * jax.random.normal(ks[7], (Cout,), jnp.float32),
        beta2=0.05 * jax.random.normal(ks[8], (Cout,), jnp.float32),
    )

    out = double_convolution_block(image, params)
    out = jax.block_until_ready(out)

    ref = reference(image, params)
    assert out.shape == (N, Cout, H, W), out.shape
    max_err = float(jnp.max(jnp.abs(out - ref)))
    assert jnp.allclose(out, ref, rtol=2e-3, atol=2e-3), max_err

    print("KERNEL_OK")
</pallas_src>

<mosaic_0001>
module attributes {stable_mosaic.version = 11 : i64} {
  func.func @kernel(%arg0: i32, %arg1: memref<2x18x64xf32, #tpu.memory_space<vmem>>, %arg2: memref<192x128xf32, #tpu.memory_space<vmem>>, %arg3: memref<384x64xf32, #tpu.memory_space<vmem>>, %arg4: memref<3x128xf32, #tpu.memory_space<vmem>>, %arg5: memref<3x64xf32, #tpu.memory_space<vmem>>, %arg6: memref<32x64xf32, #tpu.memory_space<vmem>>, %arg7: memref<2x18x128xf32, #tpu.memory_space<vmem>>) attributes {dimension_semantics = [#tpu.dimension_semantics<arbitrary>], iteration_bounds = array<i64: 1>, scalar_prefetch = 0 : i64, scratch_operands = 1 : i64, tpu.core_type = #tpu.core_type<tc>, window_params = [{pipeline_mode = #tpu.pipeline_mode<synchronous>, transform_indices = @transform_0, window_bounds = array<i64: 2, 18, 64>}, {pipeline_mode = #tpu.pipeline_mode<synchronous>, transform_indices = @transform_1, window_bounds = array<i64: 192, 128>}, {pipeline_mode = #tpu.pipeline_mode<synchronous>, transform_indices = @transform_2, window_bounds = array<i64: 384, 64>}, {pipeline_mode = #tpu.pipeline_mode<synchronous>, transform_indices = @transform_3, window_bounds = array<i64: 3, 128>}, {pipeline_mode = #tpu.pipeline_mode<synchronous>, transform_indices = @transform_4, window_bounds = array<i64: 3, 64>}, {pipeline_mode = #tpu.pipeline_mode<synchronous>, transform_indices = @transform_5, window_bounds = array<i64: 32, 64>}]} {
    %c0 = arith.constant 0 : index
    %c0_0 = arith.constant 0 : index
    %c0_1 = arith.constant 0 : index
    %0 = vector.load %arg1[%c0, %c0_0, %c0_1] : memref<2x18x64xf32, #tpu.memory_space<vmem>>, vector<2x16x64xf32>
    %c0_2 = arith.constant 0 : index
    %c1 = arith.constant 1 : index
    %c0_3 = arith.constant 0 : index
    %1 = vector.load %arg1[%c0_2, %c1, %c0_3] : memref<2x18x64xf32, #tpu.memory_space<vmem>>, vector<2x16x64xf32>
    %c0_4 = arith.constant 0 : index
    %c2 = arith.constant 2 : index
    %c0_5 = arith.constant 0 : index
    %2 = vector.load %arg1[%c0_4, %c2, %c0_5] : memref<2x18x64xf32, #tpu.memory_space<vmem>>, vector<2x16x64xf32>
    %3 = tpu.concatenate %0, %1, %2 in 2 : vector<2x16x64xf32>, vector<2x16x64xf32>, vector<2x16x64xf32> -> vector<2x16x192xf32>
    %4 = vector.shape_cast %3 : vector<2x16x192xf32> to vector<32x192xf32>
    %c0_6 = arith.constant 0 : index
    %c0_7 = arith.constant 0 : index
    %5 = vector.load %arg2[%c0_6, %c0_7] : memref<192x128xf32, #tpu.memory_space<vmem>>, vector<192x128xf32>
    %cst = arith.constant dense<0.000000e+00> : vector<32x128xf32>
    %6 = tpu.matmul %4, %5, %cst {dimension_numbers = #tpu.dot_dimension_numbers<[1], [0], [0], [1], [0, 0, 1, 1], [], []>} : vector<32x192xf32>, vector<192x128xf32>, vector<32x128xf32> -> vector<32x128xf32>
    %c0_8 = arith.constant 0 : index
    %c0_9 = arith.constant 0 : index
    %7 = vector.load %arg4[%c0_8, %c0_9] : memref<3x128xf32, #tpu.memory_space<vmem>>, vector<1x128xf32>
    %8 = vector.broadcast %7 : vector<1x128xf32> to vector<32x128xf32>
    %9 = arith.addf %6, %8 : vector<32x128xf32>
    %cst_10 = arith.constant dense<0.000000e+00> : vector<128xf32>
    %10 = vector.multi_reduction <add>, %9, %cst_10 [0] : vector<32x128xf32> to vector<128xf32>
    %11 = vector.shape_cast %10 : vector<128xf32> to vector<1x128xf32>
    %12 = arith.mulf %9, %9 : vector<32x128xf32>
    %cst_11 = arith.constant dense<0.000000e+00> : vector<128xf32>
    %13 = vector.multi_reduction <add>, %12, %cst_11 [0] : vector<32x128xf32> to vector<128xf32>
    %14 = vector.shape_cast %13 : vector<128xf32> to vector<1x128xf32>
    %15 = tpu.concatenate %11, %14 in 0 : vector<1x128xf32>, vector<1x128xf32> -> vector<2x128xf32>
    %c8_i32 = arith.constant 8 : i32
    %16 = tpu.dynamic_rotate %15 by %c8_i32 dim 1 : vector<2x128xf32>, i32 -> vector<2x128xf32>
    %17 = arith.addf %15, %16 : vector<2x128xf32>
    %c16_i32 = arith.constant 16 : i32
    %18 = tpu.dynamic_rotate %17 by %c16_i32 dim 1 : vector<2x128xf32>, i32 -> vector<2x128xf32>
    %19 = arith.addf %17, %18 : vector<2x128xf32>
    %c32_i32 = arith.constant 32 : i32
    %20 = tpu.dynamic_rotate %19 by %c32_i32 dim 1 : vector<2x128xf32>, i32 -> vector<2x128xf32>
    %21 = arith.addf %19, %20 : vector<2x128xf32>
    %c64_i32 = arith.constant 64 : i32
    %22 = tpu.dynamic_rotate %21 by %c64_i32 dim 1 : vector<2x128xf32>, i32 -> vector<2x128xf32>
    %23 = arith.addf %21, %22 : vector<2x128xf32>
    %24 = vector.extract_strided_slice %23 {offsets = [0, 0], sizes = [1, 128], strides = [1, 1]} : vector<2x128xf32> to vector<1x128xf32>
    %cst_12 = arith.constant 0.001953125 : f32
    %25 = vector.broadcast %cst_12 : f32 to vector<1x128xf32>
    %26 = arith.mulf %24, %25 : vector<1x128xf32>
    %27 = vector.extract_strided_slice %23 {offsets = [1, 0], sizes = [1, 128], strides = [1, 1]} : vector<2x128xf32> to vector<1x128xf32>
    %cst_13 = arith.constant 0.001953125 : f32
    %28 = vector.broadcast %cst_13 : f32 to vector<1x128xf32>
    %29 = arith.mulf %27, %28 : vector<1x128xf32>
    %30 = arith.mulf %26, %26 : vector<1x128xf32>
    %31 = arith.subf %29, %30 : vector<1x128xf32>
    %cst_14 = arith.constant 9.99999974E-6 : f32
    %32 = vector.broadcast %cst_14 : f32 to vector<1x128xf32>
    %33 = arith.addf %31, %32 : vector<1x128xf32>
    %34 = math.rsqrt %33 : vector<1x128xf32>
    %c1_15 = arith.constant 1 : index
    %c0_16 = arith.constant 0 : index
    %35 = vector.load %arg4[%c1_15, %c0_16] : memref<3x128xf32, #tpu.memory_space<vmem>>, vector<1x128xf32>
    %36 = arith.mulf %34, %35 : vector<1x128xf32>
    %37 = vector.broadcast %26 : vector<1x128xf32> to vector<32x128xf32>
    %38 = arith.subf %9, %37 : vector<32x128xf32>
    %39 = vector.broadcast %36 : vector<1x128xf32> to vector<32x128xf32>
    %40 = arith.mulf %38, %39 : vector<32x128xf32>
    %c2_17 = arith.constant 2 : index
    %c0_18 = arith.constant 0 : index
    %41 = vector.load %arg4[%c2_17, %c0_18] : memref<3x128xf32, #tpu.memory_space<vmem>>, vector<1x128xf32>
    %42 = vector.broadcast %41 : vector<1x128xf32> to vector<32x128xf32>
    %43 = arith.addf %40, %42 : vector<32x128xf32>
    %cst_19 = arith.constant 0.000000e+00 : f32
    %44 = vector.broadcast %cst_19 : f32 to vector<32x128xf32>
    %45 = arith.maximumf %43, %44 : vector<32x128xf32>
    %cst_20 = arith.constant 0.000000e+00 : f32
    %46 = vector.broadcast %cst_20 : f32 to vector<2x18x128xf32>
    %c0_21 = arith.constant 0 : index
    %c0_22 = arith.constant 0 : index
    %c0_23 = arith.constant 0 : index
    %47 = vector.load %arg7[%c0_21, %c0_22, %c0_23] : memref<2x18x128xf32, #tpu.memory_space<vmem>>, vector<2x18x128xf32>
    tpu.vector_store %arg7[%c0_21, %c0_22, %c0_23], %46 {strides = array<i32>} : memref<2x18x128xf32, #tpu.memory_space<vmem>>, vector<2x18x128xf32>,
    %48 = vector.shape_cast %45 : vector<32x128xf32> to vector<2x16x128xf32>
    %c0_24 = arith.constant 0 : index
    %c1_25 = arith.constant 1 : index
    %c0_26 = arith.constant 0 : index
    %49 = vector.load %arg7[%c0_24, %c1_25, %c0_26] : memref<2x18x128xf32, #tpu.memory_space<vmem>>, vector<2x16x128xf32>
    tpu.vector_store %arg7[%c0_24, %c1_25, %c0_26], %48 {strides = array<i32>} : memref<2x18x128xf32, #tpu.memory_space<vmem>>, vector<2x16x128xf32>,
    %c0_27 = arith.constant 0 : index
    %c0_28 = arith.constant 0 : index
    %c0_29 = arith.constant 0 : index
    %50 = vector.load %arg7[%c0_27, %c0_28, %c0_29] : memref<2x18x128xf32, #tpu.memory_space<vmem>>, vector<2x16x128xf32>
    %c0_30 = arith.constant 0 : index
    %c1_31 = arith.constant 1 : index
    %c0_32 = arith.constant 0 : index
    %51 = vector.load %arg7[%c0_30, %c1_31, %c0_32] : memref<2x18x128xf32, #tpu.memory_space<vmem>>, vector<2x16x128xf32>
    %c0_33 = arith.constant 0 : index
    %c2_34 = arith.constant 2 : index
    %c0_35 = arith.constant 0 : index
    %52 = vector.load %arg7[%c0_33, %c2_34, %c0_35] : memref<2x18x128xf32, #tpu.memory_space<vmem>>, vector<2x16x128xf32>
    %53 = tpu.concatenate %50, %51, %52 in 2 : vector<2x16x128xf32>, vector<2x16x128xf32>, vector<2x16x128xf32> -> vector<2x16x384xf32>
    %54 = vector.shape_cast %53 : vector<2x16x384xf32> to vector<32x384xf32>
    %c0_36 = arith.constant 0 : index
    %c0_37 = arith.constant 0 : index
    %55 = vector.load %arg3[%c0_36, %c0_37] : memref<384x64xf32, #tpu.memory_space<vmem>>, vector<384x64xf32>
    %cst_38 = arith.constant dense<0.000000e+00> : vector<32x64xf32>
    %56 = tpu.matmul %54, %55, %cst_38 {dimension_numbers = #tpu.dot_dimension_numbers<[1], [0], [0], [1], [0, 0, 1, 1], [], []>} : vector<32x384xf32>, vector<384x64xf32>, vector<32x64xf32> -> vector<32x64xf32>
    %c0_39 = arith.constant 0 : index
    %c0_40 = arith.constant 0 : index
    %57 = vector.load %arg5[%c0_39, %c0_40] : memref<3x64xf32, #tpu.memory_space<vmem>>, vector<1x64xf32>
    %58 = vector.broadcast %57 : vector<1x64xf32> to vector<32x64xf32>
    %59 = arith.addf %56, %58 : vector<32x64xf32>
    %cst_41 = arith.constant dense<0.000000e+00> : vector<64xf32>
    %60 = vector.multi_reduction <add>, %59, %cst_41 [0] : vector<32x64xf32> to vector<64xf32>
    %61 = vector.shape_cast %60 : vector<64xf32> to vector<1x64xf32>
    %62 = arith.mulf %59, %59 : vector<32x64xf32>
    %cst_42 = arith.constant dense<0.000000e+00> : vector<64xf32>
    %63 = vector.multi_reduction <add>, %62, %cst_42 [0] : vector<32x64xf32> to vector<64xf32>
    %64 = vector.shape_cast %63 : vector<64xf32> to vector<1x64xf32>
    %65 = tpu.concatenate %61, %64 in 0 : vector<1x64xf32>, vector<1x64xf32> -> vector<2x64xf32>
    %c4_i32 = arith.constant 4 : i32
    %66 = tpu.dynamic_rotate %65 by %c4_i32 dim 1 : vector<2x64xf32>, i32 -> vector<2x64xf32>
    %67 = arith.addf %65, %66 : vector<2x64xf32>
    %c8_i32_43 = arith.constant 8 : i32
    %68 = tpu.dynamic_rotate %67 by %c8_i32_43 dim 1 : vector<2x64xf32>, i32 -> vector<2x64xf32>
    %69 = arith.addf %67, %68 : vector<2x64xf32>
    %c16_i32_44 = arith.constant 16 : i32
    %70 = tpu.dynamic_rotate %69 by %c16_i32_44 dim 1 : vector<2x64xf32>, i32 -> vector<2x64xf32>
    %71 = arith.addf %69, %70 : vector<2x64xf32>
    %c32_i32_45 = arith.constant 32 : i32
    %72 = tpu.dynamic_rotate %71 by %c32_i32_45 dim 1 : vector<2x64xf32>, i32 -> vector<2x64xf32>
    %73 = arith.addf %71, %72 : vector<2x64xf32>
    %74 = vector.extract_strided_slice %73 {offsets = [0, 0], sizes = [1, 64], strides = [1, 1]} : vector<2x64xf32> to vector<1x64xf32>
    %cst_46 = arith.constant 0.001953125 : f32
    %75 = vector.broadcast %cst_46 : f32 to vector<1x64xf32>
    %76 = arith.mulf %74, %75 : vector<1x64xf32>
    %77 = vector.extract_strided_slice %73 {offsets = [1, 0], sizes = [1, 64], strides = [1, 1]} : vector<2x64xf32> to vector<1x64xf32>
    %cst_47 = arith.constant 0.001953125 : f32
    %78 = vector.broadcast %cst_47 : f32 to vector<1x64xf32>
    %79 = arith.mulf %77, %78 : vector<1x64xf32>
    %80 = arith.mulf %76, %76 : vector<1x64xf32>
    %81 = arith.subf %79, %80 : vector<1x64xf32>
    %cst_48 = arith.constant 9.99999974E-6 : f32
    %82 = vector.broadcast %cst_48 : f32 to vector<1x64xf32>
    %83 = arith.addf %81, %82 : vector<1x64xf32>
    %84 = math.rsqrt %83 : vector<1x64xf32>
    %c1_49 = arith.constant 1 : index
    %c0_50 = arith.constant 0 : index
    %85 = vector.load %arg5[%c1_49, %c0_50] : memref<3x64xf32, #tpu.memory_space<vmem>>, vector<1x64xf32>
    %86 = arith.mulf %84, %85 : vector<1x64xf32>
    %87 = vector.broadcast %76 : vector<1x64xf32> to vector<32x64xf32>
    %88 = arith.subf %59, %87 : vector<32x64xf32>
    %89 = vector.broadcast %86 : vector<1x64xf32> to vector<32x64xf32>
    %90 = arith.mulf %88, %89 : vector<32x64xf32>
    %c2_51 = arith.constant 2 : index
    %c0_52 = arith.constant 0 : index
    %91 = vector.load %arg5[%c2_51, %c0_52] : memref<3x64xf32, #tpu.memory_space<vmem>>, vector<1x64xf32>
    %92 = vector.broadcast %91 : vector<1x64xf32> to vector<32x64xf32>
    %93 = arith.addf %90, %92 : vector<32x64xf32>
    %cst_53 = arith.constant 0.000000e+00 : f32
    %94 = vector.broadcast %cst_53 : f32 to vector<32x64xf32>
    %95 = arith.maximumf %93, %94 : vector<32x64xf32>
    %c0_54 = arith.constant 0 : index
    %c1_55 = arith.constant 1 : index
    %c0_56 = arith.constant 0 : index
    %96 = vector.load %arg1[%c0_54, %c1_55, %c0_56] : memref<2x18x64xf32, #tpu.memory_space<vmem>>, vector<2x16x64xf32>
    %97 = vector.shape_cast %96 : vector<2x16x64xf32> to vector<32x64xf32>
    %98 = arith.addf %95, %97 : vector<32x64xf32>
    %c0_57 = arith.constant 0 : index
    %c0_58 = arith.constant 0 : index
    %99 = vector.load %arg6[%c0_57, %c0_58] : memref<32x64xf32, #tpu.memory_space<vmem>>, vector<32x64xf32>
    tpu.vector_store %arg6[%c0_57, %c0_58], %98 {strides = array<i32>} : memref<32x64xf32, #tpu.memory_space<vmem>>, vector<32x64xf32>,
    return
  }
  func.func @transform_0(%arg0: i32) -> (i32, i32, i32) {
    %c0_i32 = arith.constant 0 : i32
    %c0_i32_0 = arith.constant 0 : i32
    %c0_i32_1 = arith.constant 0 : i32
    %c0_i32_2 = arith.constant 0 : i32
    return %c0_i32, %c0_i32_0, %c0_i32_1 : i32, i32, i32
  }
  func.func @transform_1(%arg0: i32) -> (i32, i32) {
    %c0_i32 = arith.constant 0 : i32
    %c0_i32_0 = arith.constant 0 : i32
    %c0_i32_1 = arith.constant 0 : i32
    return %c0_i32, %c0_i32_0 : i32, i32
  }
  func.func @transform_2(%arg0: i32) -> (i32, i32) {
    %c0_i32 = arith.constant 0 : i32
    %c0_i32_0 = arith.constant 0 : i32
    %c0_i32_1 = arith.constant 0 : i32
    return %c0_i32, %c0_i32_0 : i32, i32
  }
  func.func @transform_3(%arg0: i32) -> (i32, i32) {
    %c0_i32 = arith.constant 0 : i32
    %c0_i32_0 = arith.constant 0 : i32
    %c0_i32_1 = arith.constant 0 : i32
    return %c0_i32, %c0_i32_0 : i32, i32
  }
  func.func @transform_4(%arg0: i32) -> (i32, i32) {
    %c0_i32 = arith.constant 0 : i32
    %c0_i32_0 = arith.constant 0 : i32
    %c0_i32_1 = arith.constant 0 : i32
    return %c0_i32, %c0_i32_0 : i32, i32
  }
  func.func @transform_5(%arg0: i32) -> (i32, i32) {
    %c0_i32 = arith.constant 0 : i32
    %c0_i32_0 = arith.constant 0 : i32
    %c0_i32_1 = arith.constant 0 : i32
    return %c0_i32, %c0_i32_0 : i32, i32
  }
}

</mosaic_0001>

<llo_original>
// kernel: tpu_custom_call.1
$region0: #{tpu_custom_call.1}
  #allocation0 [shape = 'u32[]', space=smem, size = 0x4, offset = 0x4, fixed_abs, tag = 'smem constant byte address 0x4 - core index']
  #allocation1 [shape = 'u32[144,128]{1,0:T(1,128)}', space=vmem, size = 0x12000, scoped, tag = 'internal scratch']
  #allocation2 [shape = 'f32[2,18,128]{2,1,0:T(8,128)}', space=vmem, size = 0x6000, scoped, tag = 'scratch operand']
  %s0 = inlined_call_operand.vmem [shape: f32[2,18,64], index: 0, kind: input, shape index: {}]
  %s1 = inlined_call_operand.vmem [shape: f32[192,128], index: 1, kind: input, shape index: {}]
  %s2 = inlined_call_operand.vmem [shape: f32[384,64], index: 2, kind: input, shape index: {}]
  %s3 = inlined_call_operand.vmem [shape: f32[3,128], index: 3, kind: input, shape index: {}]
  %s4 = inlined_call_operand.vmem [shape: f32[3,64], index: 4, kind: input, shape index: {}]
  %s5 = inlined_call_operand.hbm [shape: f32[32,64], index: 5, kind: output, shape index: {}]
  %s6 = sld [smem:[#allocation0]]
  $region30: #{tpu_custom_call.1} parent=0
    _
  %s8 = ssub.s32 1, %s6
  %s9 = scalar_select 0, %s8, %s6
  $region1: #{tpu_custom_call.1} parent=0
    #allocation3 [shape = 'u8[16384]{0}', space=vmem, size = 0x4000, scoped, tag = 'output window, operand 0, single buffered']
    #allocation4 [shape = 's32[1]{0}', space=sflag, size = 0x4, scoped, tag = 'scoped memory for tpu_custom_call.1']
    %10 = vsyncpa [#allocation4], 0
    // Predicated region
    $region2: #{tpu_custom_call.1} parent=1 // pred_check
      _
    $region3: #{tpu_custom_call.1} parent=1 // pred_check_branch
      %12 = sbr.rel (0) target = $region5
    $region4: #{tpu_custom_call.1} parent=1 // pred_region
      _
    $region5: #{tpu_custom_call.1} parent=1 // pred_fallthru
      _
    // Predicated region
    $region6: #{tpu_custom_call.1} parent=1 // pred_check
      _
    $region7: #{tpu_custom_call.1} parent=1 // pred_check_branch
      %14 = sbr.rel (0) target = $region9
    $region8: #{tpu_custom_call.1} parent=1 // pred_region
      _
    $region9: #{tpu_custom_call.1} parent=1 // pred_fallthru
      _
    // Predicated region
    $region10: #{tpu_custom_call.1} parent=1 // pred_check
      _
    $region11: #{tpu_custom_call.1} parent=1 // pred_check_branch
      %16 = sbr.rel (0) target = $region13
    $region12: #{tpu_custom_call.1} parent=1 // pred_region
      _
    $region13: #{tpu_custom_call.1} parent=1 // pred_fallthru
      _
    // Predicated region
    $region14: #{tpu_custom_call.1} parent=1 // pred_check
      _
    $region15: #{tpu_custom_call.1} parent=1 // pred_check_branch
      %18 = sbr.rel (0) target = $region17
    $region16: #{tpu_custom_call.1} parent=1 // pred_region
      _
    $region17: #{tpu_custom_call.1} parent=1 // pred_fallthru
      _
    // Predicated region
    $region18: #{tpu_custom_call.1} parent=1 // pred_check
      _
    $region19: #{tpu_custom_call.1} parent=1 // pred_check_branch
      %20 = sbr.rel (0) target = $region21
    $region20: #{tpu_custom_call.1} parent=1 // pred_region
      _
    $region21: #{tpu_custom_call.1} parent=1 // pred_fallthru
      _
    %v21 = vld [vmem:[%s0] sm:$0xff]
    %v22 = vld [vmem:[%s0 + $0x8] sm:$0xff]
    %v23 = vld [vmem:[%s0 + $0x18] sm:$0xff]
    %v24 = vld [vmem:[%s0 + $0x20] sm:$0xff]
    %v25 = vld [vmem:[%s0 + $0x1] sm:$0xff]
    %v26 = vld [vmem:[%s0 + $0x9] sm:$0xff]
    %v27 = vld [vmem:[%s0 + $0x19] sm:$0xff]
    %v28 = vld [vmem:[%s0 + $0x21] sm:$0xff]
    %v29 = vld [vmem:[%s0 + $0x2] sm:$0xff]
    %v30 = vld [vmem:[%s0 + $0xa] sm:$0xff]
    %v31 = vld [vmem:[%s0 + $0x1a] sm:$0xff]
    %v32 = vld [vmem:[%s0 + $0x22] sm:$0xff]
    %37 = vrot.lane.b32.xlu0 %v25, 64
    %v38 = vpop.permute.xlu0 %37
    %39 = vrot.lane.b32.xlu0 %v26, 64
    %v40 = vpop.permute.xlu0 %39
    %41 = vrot.lane.b32.xlu0 %v27, 64
    %v42 = vpop.permute.xlu0 %41
    %43 = vrot.lane.b32.xlu0 %v28, 64
    %v44 = vpop.permute.xlu0 %43
    %vm49 = vcmask 523264
    %v50 = vsel %vm49, %v21, %v38
    %v51 = vsel %vm49, %v22, %v40
    %v52 = vsel %vm49, %v23, %v42
    %v53 = vsel %vm49, %v24, %v44
    %v54 = vld [vmem:[%s1] sm:$0xff]
    %v55 = vld [vmem:[%s1 + $0x8] sm:$0xff]
    %v56 = vld [vmem:[%s1 + $0x10] sm:$0xff]
    %v57 = vld [vmem:[%s1 + $0x18] sm:$0xff]
    %v58 = vld [vmem:[%s1 + $0x20] sm:$0xff]
    %v59 = vld [vmem:[%s1 + $0x28] sm:$0xff]
    %v60 = vld [vmem:[%s1 + $0x30] sm:$0xff]
    %v61 = vld [vmem:[%s1 + $0x38] sm:$0xff]
    %v62 = vld [vmem:[%s1 + $0x40] sm:$0xff]
    %v63 = vld [vmem:[%s1 + $0x48] sm:$0xff]
    %v64 = vld [vmem:[%s1 + $0x50] sm:$0xff]
    %v65 = vld [vmem:[%s1 + $0x58] sm:$0xff]
    %v66 = vld [vmem:[%s1 + $0x60] sm:$0xff]
    %v67 = vld [vmem:[%s1 + $0x68] sm:$0xff]
    %v68 = vld [vmem:[%s1 + $0x70] sm:$0xff]
    %v69 = vld [vmem:[%s1 + $0x78] sm:$0xff]
    %v70 = vld [vmem:[%s1 + $0x80] sm:$0xff]
    %v71 = vld [vmem:[%s1 + $0x88] sm:$0xff]
    %v72 = vld [vmem:[%s1 + $0x90] sm:$0xff]
    %v73 = vld [vmem:[%s1 + $0x98] sm:$0xff]
    %v74 = vld [vmem:[%s1 + $0xa0] sm:$0xff]
    %v75 = vld [vmem:[%s1 + $0xa8] sm:$0xff]
    %v76 = vld [vmem:[%s1 + $0xb0] sm:$0xff]
    %v77 = vld [vmem:[%s1 + $0xb8] sm:$0xff]
    %v78 = vld [vmem:[%s3] sm:$0x1]
    %v79 = vlaneseq
    %v80 = vshrl.u32 %v79, 7
    %v81 = vsub.s32 0, %v80
    %v82 = vrot.slane %v78, %v81
    %v84 = vsel %vm49, %v29, 0
    %v87 = vsel %vm49, %v30, 0
    %v90 = vsel %vm49, %v31, 0
    %v93 = vsel %vm49, %v32, 0
    %95 = vmatprep.subr.mxu0 0.0
    %96 = vmatpush1.msra.mxu0 %v69
    %97 = vmatprep.subr.mxu0 0.0
    %98 = vmatpush1.msra.mxu0 %v68
    %99 = vmatprep.subr.mxu0 0.0
    %100 = vmatpush1.msra.mxu0 %v67
    %101 = vmatprep.subr.mxu0 0.0
    %102 = vmatpush1.msra.mxu0 %v66
    %103 = vmatprep.subr.mxu0 0.0
    %104 = vmatpush1.msra.mxu0 %v65
    %105 = vmatprep.subr.mxu0 0.0
    %106 = vmatpush1.msra.mxu0 %v64
    %107 = vmatprep.subr.mxu0 0.0
    %108 = vmatpush1.msra.mxu0 %v63
    %109 = vmatprep.subr.mxu0 0.0
    %110 = vmatpush1.msra.mxu0 %v62
    %111 = vmatprep.subr.mxu0 0.0
    %112 = vmatpush1.msra.mxu0 %v61
    %113 = vmatprep.subr.mxu0 0.0
    %114 = vmatpush1.msra.mxu0 %v60
    %115 = vmatprep.subr.mxu0 0.0
    %116 = vmatpush1.msra.mxu0 %v59
    %117 = vmatprep.subr.mxu0 0.0
    %118 = vmatpush1.msra.mxu0 %v58
    %119 = vmatprep.subr.mxu0 0.0
    %120 = vmatpush1.msra.mxu0 %v57
    %121 = vmatprep.subr.mxu0 0.0
    %122 = vmatpush1.msra.mxu0 %v56
    %123 = vmatprep.subr.mxu0 0.0
    %124 = vmatpush1.msra.mxu0 %v55
    %125 = vmatprep.subr.mxu0 0.0
    %126 = vmatpush1.msra.mxu0 %v54
    %127 = vmatprep.subr.mxu0 0.0
    %128 = vmatpush2.msra.mxu0 0.0
    %129 = vmatprep.subr.mxu0 0.0
    %130 = vmatpush2.msra.mxu0 0.0
    %131 = vmatprep.subr.mxu0 0.0
    %132 = vmatpush2.msra.mxu0 0.0
    %133 = vmatprep.subr.mxu0 0.0
    %134 = vmatpush2.msra.mxu0 0.0
    %135 = vmatprep.subr.mxu0 0.0
    %136 = vmatpush2.msra.mxu0 0.0
    %137 = vmatprep.subr.mxu0 0.0
    %138 = vmatpush2.msra.mxu0 0.0
    %139 = vmatprep.subr.mxu0 0.0
    %140 = vmatpush2.msra.mxu0 0.0
    %141 = vmatprep.subr.mxu0 0.0
    %142 = vmatpush2.msra.mxu0 0.0
    %143 = vmatprep.subr.mxu0 0.0
    %144 = vmatpush2.msra.mxu0 %v77
    %145 = vmatprep.subr.mxu0 0.0
    %146 = vmatpush2.msra.mxu0 %v76
    %147 = vmatprep.subr.mxu0 0.0
    %148 = vmatpush2.msra.mxu0 %v75
    %149 = vmatprep.subr.mxu0 0.0
    %150 = vmatpush2.msra.mxu0 %v74
    %151 = vmatprep.subr.mxu0 0.0
    %152 = vmatpush2.msra.mxu0 %v73
    %153 = vmatprep.subr.mxu0 0.0
    %154 = vmatpush2.msra.mxu0 %v72
    %155 = vmatprep.subr.mxu0 0.0
    %156 = vmatpush2.msra.mxu0 %v71
    %157 = vmatprep.subr.mxu0 0.0
    %158 = vmatpush2.msra.mxu0 %v70
    %159 = vmatprep.mubr.f32.mxu0 %v84
    %160 = vmatmul.mubr.f32.gmra.mxu0 %v50
    %v161 = vpop.f32.mrf.mxu0
    %v162 = vadd.f32 %v82, %v161
    %v163 = vpop.f32.mrf.mxu0
    %164 = vmatprep.mubr.f32.mxu0 %v87
    %165 = vmatmul.mubr.f32.gmra.mxu0 %v51
    %v166 = vpop.f32.mrf.mxu0
    %v167 = vadd.f32 %v82, %v166
    %v168 = vpop.f32.mrf.mxu0
    %169 = vmatprep.mubr.f32.mxu0 %v90
    %170 = vmatmul.mubr.f32.gmra.mxu0 %v52
    %v171 = vpop.f32.mrf.mxu0
    %v172 = vadd.f32 %v82, %v171
    %v173 = vpop.f32.mrf.mxu0
    %174 = vmatprep.mubr.f32.mxu0 %v93
    %175 = vmatmul.mubr.f32.gmra.mxu0 %v53
    %v176 = vpop.f32.mrf.mxu0
    %v177 = vadd.f32 %v82, %v176
    %v178 = vpop.f32.mrf.mxu0
    %179 = vdwg.mxu0
    %v180 = vadd.f32 %v162, %v167
    %v181 = vadd.f32 %v180, %v172
    %v182 = vadd.f32 %v181, %v177
    %v183 = vrot.slane %v182, 4
    %v184 = vadd.f32 %v182, %v183
    %v185 = vrot.slane %v184, 2
    %v186 = vadd.f32 %v184, %v185
    %v187 = vrot.slane %v186, 1
    %v188 = vadd.f32 %v186, %v187
    %v189 = vmul.f32 %v162, %v162
    %v190 = vmul.f32 %v167, %v167
    %v191 = vmul.f32 %v172, %v172
    %v192 = vmul.f32 %v177, %v177
    %v193 = vadd.f32 %v189, %v190
    %v194 = vadd.f32 %v193, %v191
    %v195 = vadd.f32 %v194, %v192
    %v196 = vrot.slane %v195, 4
    %v197 = vadd.f32 %v195, %v196
    %v198 = vrot.slane %v197, 2
    %v199 = vadd.f32 %v197, %v198
    %v200 = vrot.slane %v199, 1
    %v201 = vadd.f32 %v199, %v200
    %vm202 = vcmask 1040384
    %v203 = vsel %vm202, %v188, %v201
    %204 = vrot.lane.b32.xlu0 %v203, 8
    %v205 = vpop.permute.xlu0 %204
    %v206 = vadd.f32 %v203, %v205
    %207 = vrot.lane.b32.xlu0 %v206, 16
    %v208 = vpop.permute.xlu0 %207
    %v209 = vadd.f32 %v206, %v208
    %210 = vrot.lane.b32.xlu0 %v209, 32
    %v211 = vpop.permute.xlu0 %210
    %v212 = vadd.f32 %v209, %v211
    %213 = vrot.lane.b32.xlu0 %v212, 64
    %v214 = vpop.permute.xlu0 %213
    %v215 = vadd.f32 %v212, %v214
    %v216 = vmul.f32 %v215, 0.001953125
    %v217 = vmul.f32 %v216, %v216
    %v219 = vrot.slane %v217, 7
    %v221 = vsub.f32 %v216, %v219
    %v222 = vadd.f32 %v221, 1e-05
    %v223 = vrsqrt.pop %v222
    %v224 = vld [vmem:[%s3 + $0x1] sm:$0x1]
    %v226 = vrot.slane %v224, 7
    %v228 = vmul.f32 %v223, %v226
    %v229 = vlaneseq
    %v230 = vshrl.u32 %v229, 7
    %v231 = vsub.s32 0, %v230
    %v232 = vrot.slane %v216, %v231
    %v233 = vsub.f32 %v162, %v232
    %v234 = vsub.f32 %v167, %v232
    %v235 = vsub.f32 %v172, %v232
    %v236 = vsub.f32 %v177, %v232
    %v237 = vlaneseq
    %v238 = vshrl.u32 %v237, 7
    %v239 = vsub.s32 1, %v238
    %v240 = vrot.slane %v228, %v239
    %v241 = vmul.f32 %v233, %v240
    %v242 = vmul.f32 %v234, %v240
    %v243 = vmul.f32 %v235, %v240
    %v244 = vmul.f32 %v236, %v240
    %v245 = vld [vmem:[%s3 + $0x2] sm:$0x1]
    %v246 = vlaneseq
    %v247 = vshrl.u32 %v246, 7
    %v248 = vsub.s32 0, %v247
    %v249 = vrot.slane %v245, %v248
    %v250 = vadd.f32 %v241, %v249
    %v251 = vadd.f32 %v242, %v249
    %v252 = vadd.f32 %v243, %v249
    %v253 = vadd.f32 %v244, %v249
    %v254 = vmax.f32 %v250, 0.0
    %v255 = vmax.f32 %v251, 0.0
    %v256 = vmax.f32 %v252, 0.0
    %v257 = vmax.f32 %v253, 0.0
    %258 = vst [vmem:[#allocation2] sm:$0xff] 0.0
    %259 = vst [vmem:[#allocation2 + $0x8] sm:$0xff] 0.0
    %260 = vst [vmem:[#allocation2 + $0x10] sm:$0x3] 0.0
    %261 = vst [vmem:[#allocation2 + $0x18] sm:$0xff] 0.0
    %262 = vst [vmem:[#allocation2 + $0x20] sm:$0xff] 0.0
    %263 = vst [vmem:[#allocation2 + $0x28] sm:$0x3] 0.0
    %264 = vst [vmem:[#allocation2 + $0x1] sm:$0xff] %v254
    %265 = vst [vmem:[#allocation2 + $0x9] sm:$0xff] %v255
    %266 = vst [vmem:[#allocation2 + $0x19] sm:$0xff] %v256
    %267 = vst [vmem:[#allocation2 + $0x21] sm:$0xff] %v257
    %v268 = vld [vmem:[#allocation2] sm:$0xff]
    %v269 = vld [vmem:[#allocation2 + $0x8] sm:$0xff]
    %v270 = vld [vmem:[#allocation2 + $0x18] sm:$0xff]
    %v271 = vld [vmem:[#allocation2 + $0x20] sm:$0xff]
    %v272 = vld [vmem:[#allocation2 + $0x1] sm:$0xff]
    %v273 = vld [vmem:[#allocation2 + $0x9] sm:$0xff]
    %v274 = vld [vmem:[#allocation2 + $0x19] sm:$0xff]
    %v275 = vld [vmem:[#allocation2 + $0x21] sm:$0xff]
    %v276 = vld [vmem:[#allocation2 + $0x2] sm:$0xff]
    %v277 = vld [vmem:[#allocation2 + $0xa] sm:$0xff]
    %v278 = vld [vmem:[#allocation2 + $0x1a] sm:$0xff]
    %v279 = vld [vmem:[#allocation2 + $0x22] sm:$0xff]
    %v280 = vld [vmem:[%s2] sm:$0xff]
    %v281 = vld [vmem:[%s2 + $0x8] sm:$0xff]
    %v282 = vld [vmem:[%s2 + $0x10] sm:$0xff]
    %v283 = vld [vmem:[%s2 + $0x18] sm:$0xff]
    %v284 = vld [vmem:[%s2 + $0x20] sm:$0xff]
    %v285 = vld [vmem:[%s2 + $0x28] sm:$0xff]
    %v286 = vld [vmem:[%s2 + $0x30] sm:$0xff]
    %v287 = vld [vmem:[%s2 + $0x38] sm:$0xff]
    %v288 = vld [vmem:[%s2 + $0x40] sm:$0xff]
    %v289 = vld [vmem:[%s2 + $0x48] sm:$0xff]
    %v290 = vld [vmem:[%s2 + $0x50] sm:$0xff]
    %v291 = vld [vmem:[%s2 + $0x58] sm:$0xff]
    %v292 = vld [vmem:[%s2 + $0x60] sm:$0xff]
    %v293 = vld [vmem:[%s2 + $0x68] sm:$0xff]
    %v294 = vld [vmem:[%s2 + $0x70] sm:$0xff]
    %v295 = vld [vmem:[%s2 + $0x78] sm:$0xff]
    %v296 = vld [vmem:[%s2 + $0x80] sm:$0xff]
    %v297 = vld [vmem:[%s2 + $0x88] sm:$0xff]
    %v298 = vld [vmem:[%s2 + $0x90] sm:$0xff]
    %v299 = vld [vmem:[%s2 + $0x98] sm:$0xff]
    %v300 = vld [vmem:[%s2 + $0xa0] sm:$0xff]
    %v301 = vld [vmem:[%s2 + $0xa8] sm:$0xff]
    %v302 = vld [vmem:[%s2 + $0xb0] sm:$0xff]
    %v303 = vld [vmem:[%s2 + $0xb8] sm:$0xff]
    %v304 = vld [vmem:[%s2 + $0xc0] sm:$0xff]
    %v305 = vld [vmem:[%s2 + $0xc8] sm:$0xff]
    %v306 = vld [vmem:[%s2 + $0xd0] sm:$0xff]
    %v307 = vld [vmem:[%s2 + $0xd8] sm:$0xff]
    %v308 = vld [vmem:[%s2 + $0xe0] sm:$0xff]
    %v309 = vld [vmem:[%s2 + $0xe8] sm:$0xff]
    %v310 = vld [vmem:[%s2 + $0xf0] sm:$0xff]
    %v311 = vld [vmem:[%s2 + $0xf8] sm:$0xff]
    %v312 = vld [vmem:[%s2 + $0x100] sm:$0xff]
    %v313 = vld [vmem:[%s2 + $0x108] sm:$0xff]
    %v314 = vld [vmem:[%s2 + $0x110] sm:$0xff]
    %v315 = vld [vmem:[%s2 + $0x118] sm:$0xff]
    %v316 = vld [vmem:[%s2 + $0x120] sm:$0xff]
    %v317 = vld [vmem:[%s2 + $0x128] sm:$0xff]
    %v318 = vld [vmem:[%s2 + $0x130] sm:$0xff]
    %v319 = vld [vmem:[%s2 + $0x138] sm:$0xff]
    %v320 = vld [vmem:[%s2 + $0x140] sm:$0xff]
    %v321 = vld [vmem:[%s2 + $0x148] sm:$0xff]
    %v322 = vld [vmem:[%s2 + $0x150] sm:$0xff]
    %v323 = vld [vmem:[%s2 + $0x158] sm:$0xff]
    %v324 = vld [vmem:[%s2 + $0x160] sm:$0xff]
    %v325 = vld [vmem:[%s2 + $0x168] sm:$0xff]
    %v326 = vld [vmem:[%s2 + $0x170] sm:$0xff]
    %v327 = vld [vmem:[%s2 + $0x178] sm:$0xff]
    %v328 = vld [vmem:[%s4] sm:$0x1]
    %v329 = vlaneseq
    %v330 = vshrl.u32 %v329, 7
    %v331 = vsub.s32 0, %v330
    %v332 = vrot.slane %v328, %v331
    %333 = vmatprep.subr.mxu0 0.0
    %334 = vmatpush1.msra.mxu0 %v295
    %335 = vmatprep.subr.mxu0 0.0
    %336 = vmatpush1.msra.mxu0 %v294
    %337 = vmatprep.subr.mxu0 0.0
    %338 = vmatpush1.msra.mxu0 %v293
    %339 = vmatprep.subr.mxu0 0.0
    %340 = vmatpush1.msra.mxu0 %v292
    %341 = vmatprep.subr.mxu0 0.0
    %342 = vmatpush1.msra.mxu0 %v291
    %343 = vmatprep.subr.mxu0 0.0
    %344 = vmatpush1.msra.mxu0 %v290
    %345 = vmatprep.subr.mxu0 0.0
    %346 = vmatpush1.msra.mxu0 %v289
    %347 = vmatprep.subr.mxu0 0.0
    %348 = vmatpush1.msra.mxu0 %v288
    %349 = vmatprep.subr.mxu0 0.0
    %350 = vmatpush1.msra.mxu0 %v287
    %351 = vmatprep.subr.mxu0 0.0
    %352 = vmatpush1.msra.mxu0 %v286
    %353 = vmatprep.subr.mxu0 0.0
    %354 = vmatpush1.msra.mxu0 %v285
    %355 = vmatprep.subr.mxu0 0.0
    %356 = vmatpush1.msra.mxu0 %v284
    %357 = vmatprep.subr.mxu0 0.0
    %358 = vmatpush1.msra.mxu0 %v283
    %359 = vmatprep.subr.mxu0 0.0
    %360 = vmatpush1.msra.mxu0 %v282
    %361 = vmatprep.subr.mxu0 0.0
    %362 = vmatpush1.msra.mxu0 %v281
    %363 = vmatprep.subr.mxu0 0.0
    %364 = vmatpush1.msra.mxu0 %v280
    %365 = vmatprep.subr.mxu0 0.0
    %366 = vmatpush2.msra.mxu0 %v311
    %367 = vmatprep.subr.mxu0 0.0
    %368 = vmatpush2.msra.mxu0 %v310
    %369 = vmatprep.subr.mxu0 0.0
    %370 = vmatpush2.msra.mxu0 %v309
    %371 = vmatprep.subr.mxu0 0.0
    %372 = vmatpush2.msra.mxu0 %v308
    %373 = vmatprep.subr.mxu0 0.0
    %374 = vmatpush2.msra.mxu0 %v307
    %375 = vmatprep.subr.mxu0 0.0
    %376 = vmatpush2.msra.mxu0 %v306
    %377 = vmatprep.subr.mxu0 0.0
    %378 = vmatpush2.msra.mxu0 %v305
    %379 = vmatprep.subr.mxu0 0.0
    %380 = vmatpush2.msra.mxu0 %v304
    %381 = vmatprep.subr.mxu0 0.0
    %382 = vmatpush2.msra.mxu0 %v303
    %383 = vmatprep.subr.mxu0 0.0
    %384 = vmatpush2.msra.mxu0 %v302
    %385 = vmatprep.subr.mxu0 0.0
    %386 = vmatpush2.msra.mxu0 %v301
    %387 = vmatprep.subr.mxu0 0.0
    %388 = vmatpush2.msra.mxu0 %v300
    %389 = vmatprep.subr.mxu0 0.0
    %390 = vmatpush2.msra.mxu0 %v299
    %391 = vmatprep.subr.mxu0 0.0
    %392 = vmatpush2.msra.mxu0 %v298
    %393 = vmatprep.subr.mxu0 0.0
    %394 = vmatpush2.msra.mxu0 %v297
    %395 = vmatprep.subr.mxu0 0.0
    %396 = vmatpush2.msra.mxu0 %v296
    %397 = vmatprep.mubr.f32.mxu0 %v272
    %398 = vmatmul.mubr.f32.gmra.mxu0 %v268
    %v399 = vpop.f32.mrf.mxu0
    %v400 = vadd.f32 %v332, %v399
    %v401 = vpop.f32.mrf.mxu0
    %402 = vmatprep.mubr.f32.mxu0 %v273
    %403 = vmatmul.mubr.f32.gmra.mxu0 %v269
    %v404 = vpop.f32.mrf.mxu0
    %v405 = vadd.f32 %v332, %v404
    %v406 = vpop.f32.mrf.mxu0
    %407 = vmatprep.mubr.f32.mxu0 %v274
    %408 = vmatmul.mubr.f32.gmra.mxu0 %v270
    %v409 = vpop.f32.mrf.mxu0
    %v410 = vadd.f32 %v332, %v409
    %v411 = vpop.f32.mrf.mxu0
    %412 = vmatprep.mubr.f32.mxu0 %v275
    %413 = vmatmul.mubr.f32.gmra.mxu0 %v271
    %v414 = vpop.f32.mrf.mxu0
    %v415 = vadd.f32 %v332, %v414
    %v416 = vpop.f32.mrf.mxu0
    %417 = vdwg.mxu0
    %418 = vmatprep.subr.mxu0 0.0
    %419 = vmatpush1.msra.mxu0 %v327
    %420 = vmatprep.subr.mxu0 0.0
    %421 = vmatpush1.msra.mxu0 %v326
    %422 = vmatprep.subr.mxu0 0.0
    %423 = vmatpush1.msra.mxu0 %v325
    %424 = vmatprep.subr.mxu0 0.0
    %425 = vmatpush1.msra.mxu0 %v324
    %426 = vmatprep.subr.mxu0 0.0
    %427 = vmatpush1.msra.mxu0 %v323
    %428 = vmatprep.subr.mxu0 0.0
    %429 = vmatpush1.msra.mxu0 %v322
    %430 = vmatprep.subr.mxu0 0.0
    %431 = vmatpush1.msra.mxu0 %v321
    %432 = vmatprep.subr.mxu0 0.0
    %433 = vmatpush1.msra.mxu0 %v320
    %434 = vmatprep.subr.mxu0 0.0
    %435 = vmatpush1.msra.mxu0 %v319
    %436 = vmatprep.subr.mxu0 0.0
    %437 = vmatpush1.msra.mxu0 %v318
    %438 = vmatprep.subr.mxu0 0.0
    %439 = vmatpush1.msra.mxu0 %v317
    %440 = vmatprep.subr.mxu0 0.0
    %441 = vmatpush1.msra.mxu0 %v316
    %442 = vmatprep.subr.mxu0 0.0
    %443 = vmatpush1.msra.mxu0 %v315
    %444 = vmatprep.subr.mxu0 0.0
    %445 = vmatpush1.msra.mxu0 %v314
    %446 = vmatprep.subr.mxu0 0.0
    %447 = vmatpush1.msra.mxu0 %v313
    %448 = vmatprep.subr.mxu0 0.0
    %449 = vmatpush1.msra.mxu0 %v312
    %450 = vmatprep.subr.mxu0 0.0
    %451 = vmatpush2.msra.mxu0 0.0
    %452 = vmatprep.subr.mxu0 0.0
    %453 = vmatpush2.msra.mxu0 0.0
    %454 = vmatprep.subr.mxu0 0.0
    %455 = vmatpush2.msra.mxu0 0.0
    %456 = vmatprep.subr.mxu0 0.0
    %457 = vmatpush2.msra.mxu0 0.0
    %458 = vmatprep.subr.mxu0 0.0
    %459 = vmatpush2.msra.mxu0 0.0
    %460 = vmatprep.subr.mxu0 0.0
    %461 = vmatpush2.msra.mxu0 0.0
    %462 = vmatprep.subr.mxu0 0.0
    %463 = vmatpush2.msra.mxu0 0.0
    %464 = vmatprep.subr.mxu0 0.0
    %465 = vmatpush2.msra.mxu0 0.0
    %466 = vmatprep.subr.mxu0 0.0
    %467 = vmatpush2.msra.mxu0 0.0
    %468 = vmatprep.subr.mxu0 0.0
    %469 = vmatpush2.msra.mxu0 0.0
    %470 = vmatprep.subr.mxu0 0.0
    %471 = vmatpush2.msra.mxu0 0.0
    %472 = vmatprep.subr.mxu0 0.0
    %473 = vmatpush2.msra.mxu0 0.0
    %474 = vmatprep.subr.mxu0 0.0
    %475 = vmatpush2.msra.mxu0 0.0
    %476 = vmatprep.subr.mxu0 0.0
    %477 = vmatpush2.msra.mxu0 0.0
    %478 = vmatprep.subr.mxu0 0.0
    %479 = vmatpush2.msra.mxu0 0.0
    %480 = vmatprep.subr.mxu0 0.0
    %481 = vmatpush2.msra.mxu0 0.0
    %482 = vmatprep.mubr.f32.mxu0 0.0
    %483 = vmatmul.mubr.f32.gmra.mxu0 %v276
    %v484 = vpop.f32.mrf.mxu0
    %v485 = vadd.f32 %v400, %v484
    %v486 = vpop.f32.mrf.mxu0
    %487 = vmatprep.mubr.f32.mxu0 0.0
    %488 = vmatmul.mubr.f32.gmra.mxu0 %v277
    %v489 = vpop.f32.mrf.mxu0
    %v490 = vadd.f32 %v405, %v489
    %v491 = vpop.f32.mrf.mxu0
    %492 = vmatprep.mubr.f32.mxu0 0.0
    %493 = vmatmul.mubr.f32.gmra.mxu0 %v278
    %v494 = vpop.f32.mrf.mxu0
    %v495 = vadd.f32 %v410, %v494
    %v496 = vpop.f32.mrf.mxu0
    %497 = vmatprep.mubr.f32.mxu0 0.0
    %498 = vmatmul.mubr.f32.gmra.mxu0 %v279
    %v499 = vpop.f32.mrf.mxu0
    %v500 = vadd.f32 %v415, %v499
    %v501 = vpop.f32.mrf.mxu0
    %502 = vdwg.mxu0
    %v503 = vsel %vm49, %v485, 0.0
    %v504 = vsel %vm49, %v490, 0.0
    %v505 = vadd.f32 %v503, %v504
    %v506 = vsel %vm49, %v495, 0.0
    %v507 = vadd.f32 %v505, %v506
    %v508 = vsel %vm49, %v500, 0.0
    %v509 = vadd.f32 %v507, %v508
    %v510 = vrot.slane %v509, 4
    %v511 = vadd.f32 %v509, %v510
    %v512 = vrot.slane %v511, 2
    %v513 = vadd.f32 %v511, %v512
    %v514 = vrot.slane %v513, 1
    %v515 = vadd.f32 %v513, %v514
    %v516 = vmul.f32 %v485, %v485
    %v517 = vmul.f32 %v490, %v490
    %v518 = vmul.f32 %v495, %v495
    %v519 = vmul.f32 %v500, %v500
    %v520 = vsel %vm49, %v516, 0.0
    %v521 = vsel %vm49, %v517, 0.0
    %v522 = vadd.f32 %v520, %v521
    %v523 = vsel %vm49, %v518, 0.0
    %v524 = vadd.f32 %v522, %v523
    %v525 = vsel %vm49, %v519, 0.0
    %v526 = vadd.f32 %v524, %v525
    %v527 = vrot.slane %v526, 4
    %v528 = vadd.f32 %v526, %v527
    %v529 = vrot.slane %v528, 2
    %v530 = vadd.f32 %v528, %v529
    %v531 = vrot.slane %v530, 1
    %v532 = vadd.f32 %v530, %v531
    %v533 = vsel %vm202, %v515, %v532
    %vm534 = vcmask 1048064
    %535 = vrot.lane.b32.xlu0 %v533, 64
    %v536 = vpop.permute.xlu0 %535
    %v537 = vsel %vm534, %v536, %v533
    %538 = vrot.lane.b32.xlu0 %v537, 64
    %v539 = vpop.permute.xlu0 %538
    %v540 = vsel %vm534, %v539, %v533
    %542 = vrot.lane.b32.xlu0 %v540, 68
    %v543 = vpop.permute.xlu0 %542
    %v545 = vadd.f32 %v533, %v543
    %546 = vrot.lane.b32.xlu0 %v545, 64
    %v547 = vpop.permute.xlu0 %546
    %v548 = vsel %vm534, %v547, %v545
    %549 = vrot.lane.b32.xlu0 %v548, 64
    %v550 = vpop.permute.xlu0 %549
    %v551 = vsel %vm534, %v550, %v545
    %553 = vrot.lane.b32.xlu0 %v551, 72
    %v554 = vpop.permute.xlu0 %553
    %v556 = vadd.f32 %v545, %v554
    %557 = vrot.lane.b32.xlu0 %v556, 64
    %v558 = vpop.permute.xlu0 %557
    %v559 = vsel %vm534, %v558, %v556
    %560 = vrot.lane.b32.xlu0 %v559, 64
    %v561 = vpop.permute.xlu0 %560
    %v562 = vsel %vm534, %v561, %v556
    %564 = vrot.lane.b32.xlu0 %v562, 80
    %v565 = vpop.permute.xlu0 %564
    %v567 = vadd.f32 %v556, %v565
    %568 = vrot.lane.b32.xlu0 %v567, 64
    %v569 = vpop.permute.xlu0 %568
    %v570 = vsel %vm534, %v569, %v567
    %571 = vrot.lane.b32.xlu0 %v570, 64
    %v572 = vpop.permute.xlu0 %571
    %v573 = vsel %vm534, %v572, %v567
    %575 = vrot.lane.b32.xlu0 %v573, 96
    %v576 = vpop.permute.xlu0 %575
    %v578 = vadd.f32 %v567, %v576
    %v579 = vmul.f32 %v578, 0.001953125
    %v580 = vmul.f32 %v579, %v579
    %v582 = vrot.slane %v580, 7
    %v584 = vsub.f32 %v579, %v582
    %v585 = vadd.f32 %v584, 1e-05
    %v586 = vrsqrt.pop %v585
    %v587 = vld [vmem:[%s4 + $0x1] sm:$0x1]
    %v589 = vrot.slane %v587, 7
    %v591 = vmul.f32 %v586, %v589
    %v592 = vlaneseq
    %v593 = vshrl.u32 %v592, 7
    %v594 = vsub.s32 0, %v593
    %v595 = vrot.slane %v579, %v594
    %v596 = vsub.f32 %v485, %v595
    %v597 = vsub.f32 %v490, %v595
    %v598 = vsub.f32 %v495, %v595
    %v599 = vsub.f32 %v500, %v595
    %v600 = vlaneseq
    %v601 = vshrl.u32 %v600, 7
    %v602 = vsub.s32 1, %v601
    %v603 = vrot.slane %v591, %v602
    %v604 = vmul.f32 %v596, %v603
    %v605 = vmul.f32 %v597, %v603
    %v606 = vmul.f32 %v598, %v603
    %v607 = vmul.f32 %v599, %v603
    %v608 = vld [vmem:[%s4 + $0x2] sm:$0x1]
    %v609 = vlaneseq
    %v610 = vshrl.u32 %v609, 7
    %v611 = vsub.s32 0, %v610
    %v612 = vrot.slane %v608, %v611
    %v613 = vadd.f32 %v604, %v612
    %v614 = vadd.f32 %v605, %v612
    %v615 = vadd.f32 %v606, %v612
    %v616 = vadd.f32 %v607, %v612
    %v617 = vmax.f32 %v613, 0.0
    %v618 = vmax.f32 %v614, 0.0
    %v619 = vmax.f32 %v615, 0.0
    %v620 = vmax.f32 %v616, 0.0
    %v621 = vld [vmem:[%s0 + $0x1] sm:$0xff]
    %v622 = vld [vmem:[%s0 + $0x9] sm:$0xff]
    %v623 = vld [vmem:[%s0 + $0x19] sm:$0xff]
    %v624 = vld [vmem:[%s0 + $0x21] sm:$0xff]
    %v625 = vadd.f32 %v617, %v621
    %v626 = vadd.f32 %v618, %v622
    %v627 = vadd.f32 %v619, %v623
    %v628 = vadd.f32 %v620, %v624
    %629 = vst.msk [vmem:[#allocation3] sm:$0xff] %vm49, %v625
    %630 = vst.msk [vmem:[#allocation3 + $0x8] sm:$0xff] %vm49, %v626
    %631 = vst.msk [vmem:[#allocation3 + $0x10] sm:$0xff] %vm49, %v627
    %632 = vst.msk [vmem:[#allocation3 + $0x18] sm:$0xff] %vm49, %v628
    // Predicated region
    $region22: #{tpu_custom_call.1} parent=1 // pred_check
      _
    $region23: #{tpu_custom_call.1} parent=1 // pred_check_branch
      %634 = sbr.rel (0) target = $region25
    $region24: #{tpu_custom_call.1} parent=1 // pred_region
      %s636 = ssub.s32 512, 512
      %637 = vsyncadd [#allocation4], %s636
      %s638 = sshll.u32 [#allocation3], 4
      %s639 = int_to_ptr.vmem [resolvable:$true] %s638
      %644 = dma.vmem_to_hbm [thread:$0]  %s639, 512, %s5, [#allocation4], 128, 128, 8
    $region25: #{tpu_custom_call.1} parent=1 // pred_fallthru
      _
    // Predicated region
    $region26: #{tpu_custom_call.1} parent=1 // pred_check
      _
    $region27: #{tpu_custom_call.1} parent=1 // pred_check_branch
      %646 = sbr.rel (0) target = $region29
    $region28: #{tpu_custom_call.1} parent=1 // pred_region
      %647 = dma.done [#allocation4], 512
    $region29: #{tpu_custom_call.1} parent=1 // pred_fallthru
      _
    %648 = vsyncpa [#allocation4], 1

</llo_original>
